<compile_context>
chip_gen: v6e
topology: v6e:2x2x1
jax: 0.10.0
libtpu: 0.0.40
codegen_flags: <defaults>
</compile_context>

<pallas_src>
import functools

import jax
import jax.numpy as jnp
from jax import lax
from jax.experimental import pallas as pl
from jax.experimental.pallas import tpu as pltpu

PRELU_ALPHA = 0.25  # nn.PReLU default init
BN_EPS = 1e-5

# 3x3 taps in row-major order; conv_1 weight packing in make_params must match.
TAP_ORDER = tuple((ki, kj) for ki in range(3) for kj in range(3))


def _ceil_to(x, m):
    return -(-x // m) * m


def _vmem_capacity_bytes():
    """Per-core VMEM capacity; conservative 64 MiB (v7x per-TC) fallback."""
    try:
        info = pltpu.get_tpu_info()
        cap = getattr(info, "vmem_capacity_bytes", None)
        if cap:
            return int(cap)
    except Exception:
        pass
    return 64 << 20


def _choose_tile(n, cap):
    """tile_n: full axis when small, else a multiple of 128 (lane-dense output store),
    preferring >=2 grid steps along N (dual-TC v7x) when that adds no padding."""
    if n <= 128:
        return n
    cap = max(128, (cap // 128) * 128)
    tile = min(cap, _ceil_to(n, 128))
    if _ceil_to(n, tile) == tile and tile >= 256:      # would be a single N-step
        half = _ceil_to(tile // 2, 128)
        if _ceil_to(n, half) <= tile:                  # splitting adds no padding
            tile = half
    return tile


def _vmem_budget(tile_n, c0, c1, c2, out_bytes, cap_bytes):
    """Scoped-VMEM request: double-buffered grid-varying tiles + resident weights + margin,
    clamped to ~75% of physical per-core VMEM (<=48 MiB on v7x, <=96 MiB on v5e/v6e)."""
    lane = lambda c: _ceil_to(max(c, 1), 128)
    s16 = lambda r: _ceil_to(max(r, 1), 16)            # bf16 sublane packing
    s8 = lambda r: _ceil_to(max(r, 1), 8)
    patch = s16(tile_n) * lane(9 * c0) * 2             # bf16 patch tile
    xcen = s16(tile_n) * lane(c0) * 2                  # bf16 shortcut tile
    out = s8(c2) * lane(tile_n) * out_bytes            # output tile (transposed)
    wts = (s16(9 * c0) * lane(c1) + s16(c1) * lane(c2) + s16(c0) * lane(c2)) * 2
    bias = 8 * lane(c1) * 4 + s8(c2) * lane(1) * 4
    need = 2 * (patch + xcen + out) + (wts + bias) + (2 << 20)
    return int(min(max(need, 4 << 20), (cap_bytes * 3) // 4))


def _residual_block_kernel(p_ref, xc_ref, w1_ref, b1_ref, w2_ref, ws_ref, bias_ref, out_ref):
    # p_ref:    (1, tn, 9*C0) bf16 -- lane-dense im2col patch rows
    # xc_ref:   (1, tn, C0)   bf16 -- centre tap == stride-2 shortcut input (lane aligned)
    # w1_ref:   (9*C0, C1)    bf16 -- conv_1 3x3 weights with BN1 folded in
    # b1_ref:   (1, C1)       f32  -- conv_1 bias with BN1 folded in
    # w2_ref:   (C1, C2)      bf16 -- conv_2 (1x1) weights
    # ws_ref:   (C0, C2)      bf16 -- shortcut 1x1 weights with its BN folded in
    # bias_ref: (C2, 1)       f32  -- merged bias (conv_2 bias + folded shortcut bias)
    # out_ref:  (1, C2, tn)   f32/bf16 -- transposed tile => lane-dense store
    p = p_ref[0]                                                      # (tn, 9*C0) bf16

    # conv_1 (3x3 stride-2) as a single K = 9*C0 MXU matmul, BN folded, PReLU on the VPU (f32).
    h = jnp.dot(p, w1_ref[...], preferred_element_type=jnp.float32) + b1_ref[...]
    h = jnp.where(h > 0, h, PRELU_ALPHA * h)

    # main path conv_2 (1x1) + shortcut 1x1 stride-2 conv (separate aligned operand).
    out = jnp.dot(h.astype(jnp.bfloat16), w2_ref[...], preferred_element_type=jnp.float32)
    out = out + jnp.dot(xc_ref[0], ws_ref[...], preferred_element_type=jnp.float32)

    # transpose to (C2, tn) in-kernel (XLU) so the HBM store is lane-dense in tn,
    # then merged bias + residual ReLU.
    out_t = out.T + bias_ref[...]
    out_ref[0] = jnp.maximum(out_t, 0.0).astype(out_ref.dtype)


def residual_block_pallas(x_nchw, params, tile_n=None, out_dtype=jnp.float32):
    """x_nchw: (B, C0, H, W) float32 -> (B, C2, (H+1)//2, (W+1)//2) out_dtype."""
    B, C0, H, W = x_nchw.shape
    Ho, Wo = (H + 1) // 2, (W + 1) // 2
    N = Ho * Wo
    C1 = params["w1"].shape[-1]
    C2 = params["w2"].shape[-1]

    # --- layout glue (all bf16 after the first transpose): NCHW -> NHWC, pad, im2col ---
    x = jnp.transpose(x_nchw, (0, 2, 3, 1)).astype(jnp.bfloat16)       # (B, H, W, C0)
    xp = jnp.pad(x, ((0, 0), (1, 1), (1, 1), (0, 0)))                  # (B, H+2, W+2, C0)
    taps = [xp[:, ki:ki + 2 * Ho - 1:2, kj:kj + 2 * Wo - 1:2, :]       # each (B, Ho, Wo, C0)
            for ki, kj in TAP_ORDER]
    patches = jnp.concatenate(taps, axis=-1).reshape(B, N, 9 * C0)     # (B, N, 9*C0) bf16
    xc = x[:, ::2, ::2, :].reshape(B, N, C0)                           # shortcut input, bf16

    vmem_cap = _vmem_capacity_bytes()
    tile_cap = 1024 if vmem_cap >= (100 << 20) else 512
    if tile_n is None:
        tile_n = _choose_tile(N, tile_cap)
    n_pad = _ceil_to(N, tile_n)
    n_tiles = n_pad // tile_n
    assert tile_n % 128 == 0 or (n_tiles == 1 and tile_n == n_pad == N), (N, tile_n)
    if n_pad > N:
        patches = jnp.pad(patches, ((0, 0), (0, n_pad - N), (0, 0)))
        xc = jnp.pad(xc, ((0, 0), (0, n_pad - N), (0, 0)))

    full = lambda shape: pl.BlockSpec(shape, lambda b, n: (0,) * len(shape))
    out_bytes = jnp.dtype(out_dtype).itemsize

    flops = 2 * B * n_pad * (9 * C0 * C1 + C1 * C2 + C0 * C2)
    bytes_accessed = (patches.size * 2 + xc.size * 2 + B * n_pad * C2 * out_bytes
                      + (9 * C0 * C1 + C1 * C2 + C0 * C2) * 2 + (C1 + C2) * 4)

    out_cn = pl.pallas_call(
        _residual_block_kernel,
        out_shape=jax.ShapeDtypeStruct((B, C2, n_pad), out_dtype),
        grid=(B, n_tiles),
        in_specs=[
            pl.BlockSpec((1, tile_n, 9 * C0), lambda b, n: (b, n, 0)),  # patch tile
            pl.BlockSpec((1, tile_n, C0), lambda b, n: (b, n, 0)),      # shortcut tile
            full((9 * C0, C1)),   # w1 (BN1 folded)
            full((1, C1)),        # b1 (BN1 folded)
            full((C1, C2)),       # w2
            full((C0, C2)),       # ws (shortcut BN folded)
            full((C2, 1)),        # merged post-add bias
        ],
        out_specs=pl.BlockSpec((1, C2, tile_n), lambda b, n: (b, 0, n)),
        compiler_params=pltpu.CompilerParams(
            dimension_semantics=("parallel", "parallel"),
            vmem_limit_bytes=_vmem_budget(tile_n, C0, C1, C2, out_bytes, vmem_cap)),
        cost_estimate=pl.CostEstimate(flops=flops, transcendentals=0,
                                      bytes_accessed=bytes_accessed),
    )(patches, xc, params["w1"], params["b1"], params["w2"], params["ws"], params["bias"])

    # slice off the N padding (no-op when n_pad == N); reshape is free (already NC(HW) order).
    return out_cn[:, :, :N].reshape(B, C2, Ho, Wo)


def make_params(key, channels):
    """Deterministic synthetic parameters. channels = (C0, C1, C2)."""
    C0, C1, C2 = channels
    ks = jax.random.split(key, 12)

    w1_oihw = 0.1 * jax.random.normal(ks[0], (C1, C0, 3, 3), jnp.float32)
    b1 = 0.1 * jax.random.normal(ks[1], (C1,), jnp.float32)
    g1 = 1.0 + 0.1 * jax.random.normal(ks[2], (C1,), jnp.float32)
    be1 = 0.1 * jax.random.normal(ks[3], (C1,), jnp.float32)
    m1 = 0.05 * jax.random.normal(ks[4], (C1,), jnp.float32)
    v1 = 1.0 + 0.1 * jax.random.uniform(ks[5], (C1,), jnp.float32)

    w2_oihw = 0.1 * jax.random.normal(ks[6], (C2, C1, 1, 1), jnp.float32)
    b2 = 0.1 * jax.random.normal(ks[7], (C2,), jnp.float32)

    ws_oihw = 0.1 * jax.random.normal(ks[8], (C2, C0, 1, 1), jnp.float32)
    bs = 0.1 * jax.random.normal(ks[9], (C2,), jnp.float32)
    gs = 1.0 + 0.1 * jax.random.normal(ks[10], (C2,), jnp.float32)
    bes = 0.1 * jax.random.normal(ks[11], (C2,), jnp.float32)
    ms = jnp.zeros((C2,), jnp.float32)
    vs = jnp.ones((C2,), jnp.float32)

    sc1 = g1 / jnp.sqrt(v1 + BN_EPS)
    sh1 = be1 - m1 * sc1
    scs = gs / jnp.sqrt(vs + BN_EPS)
    shs = bes - ms * scs

    # --- fold BN + repack for the kernel (matmul forms, bf16 weights) ---
    w1_parts = [w1_oihw[:, :, ki, kj].T for ki, kj in TAP_ORDER]       # each (C0, C1)
    w1_mat = jnp.concatenate(w1_parts, axis=0) * sc1[None, :]          # (9*C0, C1), BN1 folded
    b1_f = b1 * sc1 + sh1

    w2_mat = w2_oihw[:, :, 0, 0].T                                     # (C1, C2)
    ws_mat = ws_oihw[:, :, 0, 0].T * scs[None, :]                      # (C0, C2), BN folded
    bias_f = b2 + (bs * scs + shs)                                     # merged post-add bias

    kernel_params = dict(
        w1=w1_mat.astype(jnp.bfloat16),
        b1=b1_f.reshape(1, C1),
        w2=w2_mat.astype(jnp.bfloat16),
        ws=ws_mat.astype(jnp.bfloat16),
        bias=bias_f.reshape(C2, 1),      # (C2, 1): broadcasts over the transposed tile
    )
    ref_params = dict(w1=w1_oihw, b1=b1, sc1=sc1, sh1=sh1,
                      w2=w2_oihw, b2=b2, ws=ws_oihw, bs=bs, scs=scs, shs=shs)
    return kernel_params, ref_params


def residual_block_ref(x, p):
    """Pure-JAX f32 reference (NCHW, matches PyTorch conv semantics)."""
    dn = ("NCHW", "OIHW", "NCHW")
    out = lax.conv_general_dilated(x, p["w1"], (2, 2), ((1, 1), (1, 1)),
                                   dimension_numbers=dn)
    out = out + p["b1"][None, :, None, None]
    out = out * p["sc1"][None, :, None, None] + p["sh1"][None, :, None, None]
    out = jnp.where(out > 0, out, PRELU_ALPHA * out)
    out = lax.conv_general_dilated(out, p["w2"], (1, 1), "VALID",
                                   dimension_numbers=dn) + p["b2"][None, :, None, None]
    sc = lax.conv_general_dilated(x, p["ws"], (2, 2), "VALID",
                                  dimension_numbers=dn) + p["bs"][None, :, None, None]
    sc = sc * p["scs"][None, :, None, None] + p["shs"][None, :, None, None]
    return jnp.maximum(out + sc, 0.0)


if __name__ == "__main__":
    B, H, W = 2, 16, 16
    channels = (4, 8, 16)   # (C0, C1, C2)

    key = jax.random.PRNGKey(0)
    kx, kp = jax.random.split(key)
    x = jax.random.normal(kx, (B, channels[0], H, W), jnp.float32)
    kernel_params, ref_params = make_params(kp, channels)
    y_ref = residual_block_ref(x, ref_params)

    # default: auto tile (single full-N tile at this toy size)
    fn = jax.jit(residual_block_pallas)
    y = jax.block_until_ready(fn(x, kernel_params))
    assert y.shape == (B, channels[2], H // 2, W // 2)
    err = jnp.max(jnp.abs(y - y_ref))
    assert jnp.allclose(y, y_ref, atol=5e-2, rtol=5e-2), f"max abs err {err}"

    # padded-N / lane-dense (128-wide) output store path
    fn_t = jax.jit(functools.partial(residual_block_pallas, tile_n=128))
    y_t = jax.block_until_ready(fn_t(x, kernel_params))
    err_t = jnp.max(jnp.abs(y_t - y_ref))
    assert jnp.allclose(y_t, y_ref, atol=5e-2, rtol=5e-2), f"max abs err {err_t}"

    # optional bf16 output path (halves output write bytes)
    fn_bf = jax.jit(functools.partial(residual_block_pallas, out_dtype=jnp.bfloat16))
    y_bf = jax.block_until_ready(fn_bf(x, kernel_params)).astype(jnp.float32)
    err_bf = jnp.max(jnp.abs(y_bf - y_ref))
    assert jnp.allclose(y_bf, y_ref, atol=1e-1, rtol=1e-1), f"max abs err {err_bf}"

    print("KERNEL_OK")
</pallas_src>

<mosaic_0001>
module attributes {stable_mosaic.version = 11 : i64} {
  func.func @_residual_block_kernel(%arg0: i32, %arg1: i32, %arg2: memref<1x64x36xbf16, #tpu.memory_space<vmem>>, %arg3: memref<1x64x4xbf16, #tpu.memory_space<vmem>>, %arg4: memref<36x8xbf16, #tpu.memory_space<vmem>>, %arg5: memref<1x8xf32, #tpu.memory_space<vmem>>, %arg6: memref<8x16xbf16, #tpu.memory_space<vmem>>, %arg7: memref<4x16xbf16, #tpu.memory_space<vmem>>, %arg8: memref<16x1xf32, #tpu.memory_space<vmem>>, %arg9: memref<1x16x64xf32, #tpu.memory_space<vmem>>) attributes {dimension_semantics = [#tpu.dimension_semantics<parallel>, #tpu.dimension_semantics<parallel>], iteration_bounds = array<i64: 2, 1>, scalar_prefetch = 0 : i64, scratch_operands = 0 : i64, tpu.core_type = #tpu.core_type<tc>, window_params = [{transform_indices = @transform_0, window_bounds = array<i64: 1, 64, 36>}, {transform_indices = @transform_1, window_bounds = array<i64: 1, 64, 4>}, {pipeline_mode = #tpu.pipeline_mode<synchronous>, transform_indices = @transform_2, window_bounds = array<i64: 36, 8>}, {pipeline_mode = #tpu.pipeline_mode<synchronous>, transform_indices = @transform_3, window_bounds = array<i64: 1, 8>}, {pipeline_mode = #tpu.pipeline_mode<synchronous>, transform_indices = @transform_4, window_bounds = array<i64: 8, 16>}, {pipeline_mode = #tpu.pipeline_mode<synchronous>, transform_indices = @transform_5, window_bounds = array<i64: 4, 16>}, {pipeline_mode = #tpu.pipeline_mode<synchronous>, transform_indices = @transform_6, window_bounds = array<i64: 16, 1>}, {transform_indices = @transform_7, window_bounds = array<i64: 1, 16, 64>}]} {
    %c0 = arith.constant 0 : index
    %c0_0 = arith.constant 0 : index
    %c0_1 = arith.constant 0 : index
    %0 = vector.load %arg2[%c0, %c0_0, %c0_1] : memref<1x64x36xbf16, #tpu.memory_space<vmem>>, vector<1x64x36xbf16>
    %1 = vector.shape_cast %0 : vector<1x64x36xbf16> to vector<64x36xbf16>
    %c0_2 = arith.constant 0 : index
    %c0_3 = arith.constant 0 : index
    %2 = vector.load %arg4[%c0_2, %c0_3] : memref<36x8xbf16, #tpu.memory_space<vmem>>, vector<36x8xbf16>
    %cst = arith.constant dense<0.000000e+00> : vector<64x8xf32>
    %3 = tpu.matmul %1, %2, %cst {dimension_numbers = #tpu.dot_dimension_numbers<[1], [0], [0], [1], [0, 0, 1, 1], [], []>} : vector<64x36xbf16>, vector<36x8xbf16>, vector<64x8xf32> -> vector<64x8xf32>
    %c0_4 = arith.constant 0 : index
    %c0_5 = arith.constant 0 : index
    %4 = vector.load %arg5[%c0_4, %c0_5] : memref<1x8xf32, #tpu.memory_space<vmem>>, vector<1x8xf32>
    %5 = vector.broadcast %4 : vector<1x8xf32> to vector<64x8xf32>
    %6 = arith.addf %3, %5 : vector<64x8xf32>
    %cst_6 = arith.constant 0.000000e+00 : f32
    %7 = vector.broadcast %cst_6 : f32 to vector<64x8xf32>
    %8 = arith.cmpf ogt, %6, %7 : vector<64x8xf32>
    %cst_7 = arith.constant 2.500000e-01 : f32
    %9 = vector.broadcast %cst_7 : f32 to vector<64x8xf32>
    %10 = arith.mulf %9, %6 : vector<64x8xf32>
    %11 = arith.select %8, %6, %10 : vector<64x8xi1>, vector<64x8xf32>
    %12 = arith.truncf %11 : vector<64x8xf32> to vector<64x8xbf16>
    %c0_8 = arith.constant 0 : index
    %c0_9 = arith.constant 0 : index
    %13 = vector.load %arg6[%c0_8, %c0_9] : memref<8x16xbf16, #tpu.memory_space<vmem>>, vector<8x16xbf16>
    %cst_10 = arith.constant dense<0.000000e+00> : vector<64x16xf32>
    %14 = tpu.matmul %12, %13, %cst_10 {dimension_numbers = #tpu.dot_dimension_numbers<[1], [0], [0], [1], [0, 0, 1, 1], [], []>} : vector<64x8xbf16>, vector<8x16xbf16>, vector<64x16xf32> -> vector<64x16xf32>
    %c0_11 = arith.constant 0 : index
    %c0_12 = arith.constant 0 : index
    %c0_13 = arith.constant 0 : index
    %15 = vector.load %arg3[%c0_11, %c0_12, %c0_13] : memref<1x64x4xbf16, #tpu.memory_space<vmem>>, vector<1x64x4xbf16>
    %16 = vector.shape_cast %15 : vector<1x64x4xbf16> to vector<64x4xbf16>
    %c0_14 = arith.constant 0 : index
    %c0_15 = arith.constant 0 : index
    %17 = vector.load %arg7[%c0_14, %c0_15] : memref<4x16xbf16, #tpu.memory_space<vmem>>, vector<4x16xbf16>
    %cst_16 = arith.constant dense<0.000000e+00> : vector<64x16xf32>
    %18 = tpu.matmul %16, %17, %cst_16 {dimension_numbers = #tpu.dot_dimension_numbers<[1], [0], [0], [1], [0, 0, 1, 1], [], []>} : vector<64x4xbf16>, vector<4x16xbf16>, vector<64x16xf32> -> vector<64x16xf32>
    %19 = arith.addf %14, %18 : vector<64x16xf32>
    %20 = tpu.transpose %19, [1, 0] : vector<64x16xf32> -> vector<16x64xf32>
    %c0_17 = arith.constant 0 : index
    %c0_18 = arith.constant 0 : index
    %21 = vector.load %arg8[%c0_17, %c0_18] : memref<16x1xf32, #tpu.memory_space<vmem>>, vector<16x1xf32>
    %22 = vector.broadcast %21 : vector<16x1xf32> to vector<16x64xf32>
    %23 = arith.addf %20, %22 : vector<16x64xf32>
    %cst_19 = arith.constant 0.000000e+00 : f32
    %24 = vector.broadcast %cst_19 : f32 to vector<16x64xf32>
    %25 = arith.maximumf %23, %24 : vector<16x64xf32>
    %c0_20 = arith.constant 0 : index
    %c0_21 = arith.constant 0 : index
    %c0_22 = arith.constant 0 : index
    %26 = vector.load %arg9[%c0_20, %c0_21, %c0_22] : memref<1x16x64xf32, #tpu.memory_space<vmem>>, vector<1x16x64xf32>
    %27 = vector.shape_cast %26 : vector<1x16x64xf32> to vector<16x64xf32>
    %28 = vector.shape_cast %25 : vector<16x64xf32> to vector<1x16x64xf32>
    tpu.vector_store %arg9[%c0_20, %c0_21, %c0_22], %28 {strides = array<i32>} : memref<1x16x64xf32, #tpu.memory_space<vmem>>, vector<1x16x64xf32>,
    return
  }
  func.func @transform_0(%arg0: i32, %arg1: i32) -> (i32, i32, i32) {
    %c0_i32 = arith.constant 0 : i32
    %c0_i32_0 = arith.constant 0 : i32
    return %arg0, %arg1, %c0_i32 : i32, i32, i32
  }
  func.func @transform_1(%arg0: i32, %arg1: i32) -> (i32, i32, i32) {
    %c0_i32 = arith.constant 0 : i32
    %c0_i32_0 = arith.constant 0 : i32
    return %arg0, %arg1, %c0_i32 : i32, i32, i32
  }
  func.func @transform_2(%arg0: i32, %arg1: i32) -> (i32, i32) {
    %c0_i32 = arith.constant 0 : i32
    %c0_i32_0 = arith.constant 0 : i32
    %c0_i32_1 = arith.constant 0 : i32
    return %c0_i32, %c0_i32_0 : i32, i32
  }
  func.func @transform_3(%arg0: i32, %arg1: i32) -> (i32, i32) {
    %c0_i32 = arith.constant 0 : i32
    %c0_i32_0 = arith.constant 0 : i32
    %c0_i32_1 = arith.constant 0 : i32
    return %c0_i32, %c0_i32_0 : i32, i32
  }
  func.func @transform_4(%arg0: i32, %arg1: i32) -> (i32, i32) {
    %c0_i32 = arith.constant 0 : i32
    %c0_i32_0 = arith.constant 0 : i32
    %c0_i32_1 = arith.constant 0 : i32
    return %c0_i32, %c0_i32_0 : i32, i32
  }
  func.func @transform_5(%arg0: i32, %arg1: i32) -> (i32, i32) {
    %c0_i32 = arith.constant 0 : i32
    %c0_i32_0 = arith.constant 0 : i32
    %c0_i32_1 = arith.constant 0 : i32
    return %c0_i32, %c0_i32_0 : i32, i32
  }
  func.func @transform_6(%arg0: i32, %arg1: i32) -> (i32, i32) {
    %c0_i32 = arith.constant 0 : i32
    %c0_i32_0 = arith.constant 0 : i32
    %c0_i32_1 = arith.constant 0 : i32
    return %c0_i32, %c0_i32_0 : i32, i32
  }
  func.func @transform_7(%arg0: i32, %arg1: i32) -> (i32, i32, i32) {
    %c0_i32 = arith.constant 0 : i32
    %c0_i32_0 = arith.constant 0 : i32
    return %arg0, %c0_i32, %arg1 : i32, i32, i32
  }
}

</mosaic_0001>

<llo_original>
// kernel: residual_block_pallas.1
$region0: #{residual_block_pallas.1}
  #allocation0 [shape = 'u32[]', space=smem, size = 0x4, offset = 0x4, fixed_abs, tag = 'smem constant byte address 0x4 - core index']
  #allocation1 [shape = 'u32[144,128]{1,0:T(1,128)}', space=vmem, size = 0x12000, scoped, tag = 'internal scratch']
  %s0 = inlined_call_operand.vmem [shape: bf16[2,64,36], index: 0, kind: input, shape index: {}]
  %s1 = inlined_call_operand.vmem [shape: bf16[2,64,4], index: 1, kind: input, shape index: {}]
  %s2 = inlined_call_operand.vmem [shape: bf16[36,8], index: 2, kind: input, shape index: {}]
  %s3 = inlined_call_operand.vmem [shape: f32[1,8], index: 3, kind: input, shape index: {}]
  %s4 = inlined_call_operand.vmem [shape: bf16[8,16], index: 4, kind: input, shape index: {}]
  %s5 = inlined_call_operand.vmem [shape: bf16[4,16], index: 5, kind: input, shape index: {}]
  %s6 = inlined_call_operand.vmem [shape: f32[16,1], index: 6, kind: input, shape index: {}]
  %s7 = inlined_call_operand.vmem [shape: f32[2,16,64], index: 7, kind: output, shape index: {}]
  %s8 = sld [smem:[#allocation0]]
  $region61: #{residual_block_pallas.1} parent=0
    _
  %s10 = ssub.s32 1, %s8
  %s11 = scalar_select 0, %s10, %s8
  loop: start=0, step=1, limit=4
  $region2: #{residual_block_pallas.1} parent=0 // loop_pre_header
    _
  $region3: #{residual_block_pallas.1} parent=0 // loop_header
    %s13 = sphi 0, %s17
    %p14 = scmp.ge.s32.totalorder %s13, 4
    %s20 = sphi 0, %s32
    %s21 = sphi 0, %s28
    %s22 = sphi 0, %s20
    %s23 = sphi 0, %s21
    %s24 = sphi 0, %s22
    %s25 = sphi 0, %s23
    %s37 = sphi 0, %s39
    %s40 = sphi 0, %s37
    %s41 = sphi 0, %s40
    %s57 = sphi 0, %s41
    %s65 = sphi 0, %s67
    %s68 = sphi 0, %s65
    %s69 = sphi 0, %s68
    %s85 = sphi 0, %s69
    %s89 = sphi 0, %s89
    %s91 = sphi 0, %s89
    %s92 = sphi 0, %s91
    %s106 = sphi 0, %s92
    %s110 = sphi 0, %s110
    %s112 = sphi 0, %s110
    %s113 = sphi 0, %s112
    %s127 = sphi 0, %s113
    %s131 = sphi 0, %s131
    %s133 = sphi 0, %s131
    %s134 = sphi 0, %s133
    %s148 = sphi 0, %s134
    %s152 = sphi 0, %s152
    %s154 = sphi 0, %s152
    %s155 = sphi 0, %s154
    %s169 = sphi 0, %s155
    %s173 = sphi 0, %s173
    %s175 = sphi 0, %s173
    %s176 = sphi 0, %s175
    %s190 = sphi 0, %s176
    %s198 = sphi 0, %s200
    %s201 = sphi 0, %s198
    %s202 = sphi 0, %s201
    %s218 = sphi 0, %s202
  $region4: #{residual_block_pallas.1} parent=0 // loop_header_branch
    %16 = sbr.rel (%p14) target = $region8
  $region5: #{residual_block_pallas.1} parent=0 // loop_body
    %s18 = ssub.s32 %s13, 1
    %s19 = ssub.s32 %s13, 2
    %s26 = sadd.s32 1, %s21
    %p27 = scmp.ge.s32.totalorder %s26, 1
    %s28 = scalar_select %p27, 0, %s26
    %s29 = sadd.s32 1, %s20
    %s30 = scalar_select %p27, %s29, %s20
    %p31 = scmp.ge.s32.totalorder %s30, 2
    %s32 = scalar_select %p31, 0, %s30
    %s33 = ssub.s32 %s20, %s32
    %s34 = ssub.s32 %s21, %s28
    %s35 = sor.u32 %s33, %s34
    %p36 = scmp.eq.s32.totalorder %s35, 0
    %s38 = sadd.s32 %s37, 1
    %s39 = scalar_select %p36, %s37, %s38
    %p42 = pneg %p36
    %p43 = scmp.eq.s32.totalorder %s13, 1
    %p44 = por %p42, %p43
    %p45 = scmp.ne.s32.totalorder %s37, %s40
    %p46 = scmp.eq.s32.totalorder %s13, 0
    %p47 = por %p45, %p46
    %p48 = scmp.ne.s32.totalorder %s37, %s40
    %p49 = scmp.eq.s32.totalorder %s18, 1
    %p50 = por %p48, %p49
    %p51 = scmp.ne.s32.totalorder %s40, %s41
    %p52 = scmp.eq.s32.totalorder %s18, 0
    %p53 = por %p51, %p52
    %p54 = scmp.ne.s32.totalorder %s40, %s41
    %p55 = scmp.eq.s32.totalorder %s19, 1
    %p56 = por %p54, %p55
    %p58 = scmp.ne.s32.totalorder %s41, %s57
    %p59 = scmp.eq.s32.totalorder %s19, 0
    %p60 = por %p58, %p59
    %s61 = ssub.s32 %s20, %s32
    %s62 = ssub.s32 %s21, %s28
    %s63 = sor.u32 %s61, %s62
    %p64 = scmp.eq.s32.totalorder %s63, 0
    %s66 = sadd.s32 %s65, 1
    %s67 = scalar_select %p64, %s65, %s66
    %p70 = pneg %p64
    %p71 = scmp.eq.s32.totalorder %s13, 1
    %p72 = por %p70, %p71
    %p73 = scmp.ne.s32.totalorder %s65, %s68
    %p74 = scmp.eq.s32.totalorder %s13, 0
    %p75 = por %p73, %p74
    %p76 = scmp.ne.s32.totalorder %s65, %s68
    %p77 = scmp.eq.s32.totalorder %s18, 1
    %p78 = por %p76, %p77
    %p79 = scmp.ne.s32.totalorder %s68, %s69
    %p80 = scmp.eq.s32.totalorder %s18, 0
    %p81 = por %p79, %p80
    %p82 = scmp.ne.s32.totalorder %s68, %s69
    %p83 = scmp.eq.s32.totalorder %s19, 1
    %p84 = por %p82, %p83
    %p86 = scmp.ne.s32.totalorder %s69, %s85
    %p87 = scmp.eq.s32.totalorder %s19, 0
    %p88 = por %p86, %p87
    %s90 = sadd.s32 %s89, 1
    %p93 = scmp.eq.s32.totalorder %s13, 1
    %p94 = scmp.ne.s32.totalorder %s89, %s91
    %p95 = scmp.eq.s32.totalorder %s13, 0
    %p96 = por %p94, %p95
    %p97 = scmp.ne.s32.totalorder %s89, %s91
    %p98 = scmp.eq.s32.totalorder %s18, 1
    %p99 = por %p97, %p98
    %p100 = scmp.ne.s32.totalorder %s91, %s92
    %p101 = scmp.eq.s32.totalorder %s18, 0
    %p102 = por %p100, %p101
    %p103 = scmp.ne.s32.totalorder %s91, %s92
    %p104 = scmp.eq.s32.totalorder %s19, 1
    %p105 = por %p103, %p104
    %p107 = scmp.ne.s32.totalorder %s92, %s106
    %p108 = scmp.eq.s32.totalorder %s19, 0
    %p109 = por %p107, %p108
    %s111 = sadd.s32 %s110, 1
    %p114 = scmp.eq.s32.totalorder %s13, 1
    %p115 = scmp.ne.s32.totalorder %s110, %s112
    %p116 = scmp.eq.s32.totalorder %s13, 0
    %p117 = por %p115, %p116
    %p118 = scmp.ne.s32.totalorder %s110, %s112
    %p119 = scmp.eq.s32.totalorder %s18, 1
    %p120 = por %p118, %p119
    %p121 = scmp.ne.s32.totalorder %s112, %s113
    %p122 = scmp.eq.s32.totalorder %s18, 0
    %p123 = por %p121, %p122
    %p124 = scmp.ne.s32.totalorder %s112, %s113
    %p125 = scmp.eq.s32.totalorder %s19, 1
    %p126 = por %p124, %p125
    %p128 = scmp.ne.s32.totalorder %s113, %s127
    %p129 = scmp.eq.s32.totalorder %s19, 0
    %p130 = por %p128, %p129
    %s132 = sadd.s32 %s131, 1
    %p135 = scmp.eq.s32.totalorder %s13, 1
    %p136 = scmp.ne.s32.totalorder %s131, %s133
    %p137 = scmp.eq.s32.totalorder %s13, 0
    %p138 = por %p136, %p137
    %p139 = scmp.ne.s32.totalorder %s131, %s133
    %p140 = scmp.eq.s32.totalorder %s18, 1
    %p141 = por %p139, %p140
    %p142 = scmp.ne.s32.totalorder %s133, %s134
    %p143 = scmp.eq.s32.totalorder %s18, 0
    %p144 = por %p142, %p143
    %p145 = scmp.ne.s32.totalorder %s133, %s134
    %p146 = scmp.eq.s32.totalorder %s19, 1
    %p147 = por %p145, %p146
    %p149 = scmp.ne.s32.totalorder %s134, %s148
    %p150 = scmp.eq.s32.totalorder %s19, 0
    %p151 = por %p149, %p150
    %s153 = sadd.s32 %s152, 1
    %p156 = scmp.eq.s32.totalorder %s13, 1
    %p157 = scmp.ne.s32.totalorder %s152, %s154
    %p158 = scmp.eq.s32.totalorder %s13, 0
    %p159 = por %p157, %p158
    %p160 = scmp.ne.s32.totalorder %s152, %s154
    %p161 = scmp.eq.s32.totalorder %s18, 1
    %p162 = por %p160, %p161
    %p163 = scmp.ne.s32.totalorder %s154, %s155
    %p164 = scmp.eq.s32.totalorder %s18, 0
    %p165 = por %p163, %p164
    %p166 = scmp.ne.s32.totalorder %s154, %s155
    %p167 = scmp.eq.s32.totalorder %s19, 1
    %p168 = por %p166, %p167
    %p170 = scmp.ne.s32.totalorder %s155, %s169
    %p171 = scmp.eq.s32.totalorder %s19, 0
    %p172 = por %p170, %p171
    %s174 = sadd.s32 %s173, 1
    %p177 = scmp.eq.s32.totalorder %s13, 1
    %p178 = scmp.ne.s32.totalorder %s173, %s175
    %p179 = scmp.eq.s32.totalorder %s13, 0
    %p180 = por %p178, %p179
    %p181 = scmp.ne.s32.totalorder %s173, %s175
    %p182 = scmp.eq.s32.totalorder %s18, 1
    %p183 = por %p181, %p182
    %p184 = scmp.ne.s32.totalorder %s175, %s176
    %p185 = scmp.eq.s32.totalorder %s18, 0
    %p186 = por %p184, %p185
    %p187 = scmp.ne.s32.totalorder %s175, %s176
    %p188 = scmp.eq.s32.totalorder %s19, 1
    %p189 = por %p187, %p188
    %p191 = scmp.ne.s32.totalorder %s176, %s190
    %p192 = scmp.eq.s32.totalorder %s19, 0
    %p193 = por %p191, %p192
    %s194 = ssub.s32 %s20, %s32
    %s195 = ssub.s32 %s21, %s28
    %s196 = sor.u32 %s194, %s195
    %p197 = scmp.eq.s32.totalorder %s196, 0
    %s199 = sadd.s32 %s198, 1
    %s200 = scalar_select %p197, %s198, %s199
    %p203 = pneg %p197
    %p204 = scmp.eq.s32.totalorder %s13, 1
    %p205 = por %p203, %p204
    %p206 = scmp.ne.s32.totalorder %s198, %s201
    %p207 = scmp.eq.s32.totalorder %s13, 0
    %p208 = por %p206, %p207
    %p209 = scmp.ne.s32.totalorder %s198, %s201
    %p210 = scmp.eq.s32.totalorder %s18, 1
    %p211 = por %p209, %p210
    %p212 = scmp.ne.s32.totalorder %s201, %s202
    %p213 = scmp.eq.s32.totalorder %s18, 0
    %p214 = por %p212, %p213
    %p215 = scmp.ne.s32.totalorder %s201, %s202
    %p216 = scmp.eq.s32.totalorder %s19, 1
    %p217 = por %p215, %p216
    %p219 = scmp.ne.s32.totalorder %s202, %s218
    %p220 = scmp.eq.s32.totalorder %s19, 0
    %p221 = por %p219, %p220
    %p222 = scmp.le.s32.totalorder 1, %s13
    %p223 = scmp.lt.s32.totalorder %s13, 3
    %p224 = pnand %p222, %p223
    %p225 = pneg %p224
    // Predicated region
    $region9: #{residual_block_pallas.1} parent=5 // pred_check
      _
    $region10: #{residual_block_pallas.1} parent=5 // pred_check_branch
      %227 = sbr.rel (%p224) target = $region12
    $region11: #{residual_block_pallas.1} parent=5 // pred_region
      %s228 = ssub.s32 %s13, 1
      // Predicated region
      $region13: #{residual_block_pallas.1} parent=11 // pred_check
        %p229 = pneg %p102
      $region14: #{residual_block_pallas.1} parent=11 // pred_check_branch
        %231 = sbr.rel (%p229) target = $region16
      $region15: #{residual_block_pallas.1} parent=11 // pred_region
        _
      $region16: #{residual_block_pallas.1} parent=11 // pred_fallthru
        _
      // Predicated region
      $region17: #{residual_block_pallas.1} parent=11 // pred_check
        %p232 = pneg %p123
      $region18: #{residual_block_pallas.1} parent=11 // pred_check_branch
        %234 = sbr.rel (%p232) target = $region20
      $region19: #{residual_block_pallas.1} parent=11 // pred_region
        _
      $region20: #{residual_block_pallas.1} parent=11 // pred_fallthru
        _
      // Predicated region
      $region21: #{residual_block_pallas.1} parent=11 // pred_check
        %p235 = pneg %p144
      $region22: #{residual_block_pallas.1} parent=11 // pred_check_branch
        %237 = sbr.rel (%p235) target = $region24
      $region23: #{residual_block_pallas.1} parent=11 // pred_region
        _
      $region24: #{residual_block_pallas.1} parent=11 // pred_fallthru
        _
      // Predicated region
      $region25: #{residual_block_pallas.1} parent=11 // pred_check
        %p238 = pneg %p165
      $region26: #{residual_block_pallas.1} parent=11 // pred_check_branch
        %240 = sbr.rel (%p238) target = $region28
      $region27: #{residual_block_pallas.1} parent=11 // pred_region
        _
      $region28: #{residual_block_pallas.1} parent=11 // pred_fallthru
        _
      // Predicated region
      $region29: #{residual_block_pallas.1} parent=11 // pred_check
        %p241 = pneg %p186
      $region30: #{residual_block_pallas.1} parent=11 // pred_check_branch
        %243 = sbr.rel (%p241) target = $region32
      $region31: #{residual_block_pallas.1} parent=11 // pred_region
        _
      $region32: #{residual_block_pallas.1} parent=11 // pred_fallthru
        _
    $region12: #{residual_block_pallas.1} parent=5 // pred_fallthru
      _
    %p244 = scmp.lt.s32.totalorder %s13, 2
    // Predicated region
    $region33: #{residual_block_pallas.1} parent=5 // pred_check
      %p245 = pneg %p244
    $region34: #{residual_block_pallas.1} parent=5 // pred_check_branch
      %247 = sbr.rel (%p245) target = $region36
    $region35: #{residual_block_pallas.1} parent=5 // pred_region
      // Predicated region
      $region37: #{residual_block_pallas.1} parent=35 // pred_check
        %p248 = pneg %p47
      $region38: #{residual_block_pallas.1} parent=35 // pred_check_branch
        %250 = sbr.rel (%p248) target = $region40
      $region39: #{residual_block_pallas.1} parent=35 // pred_region
        %s251 = smul.u32 8, %s21
        %p252 = scmp.lt.s32.totalorder %s20, 1
        %s253 = scalar_select %p252, %s20, 1
        %p254 = scmp.lt.s32.totalorder %s251, 7
        %s255 = scalar_select %p254, %s251, 7
        %s256 = smul.addr %s253, 8
        %s257 = sadd.s32 %s255, %s256
        %s258 = smul.addr %s257, 4
        %s259 = scalar_lea.vmem %s0, %s258
        %s260 = smul.u32 8, %s21
      $region40: #{residual_block_pallas.1} parent=35 // pred_fallthru
        _
      // Predicated region
      $region41: #{residual_block_pallas.1} parent=35 // pred_check
        %p261 = pneg %p75
      $region42: #{residual_block_pallas.1} parent=35 // pred_check_branch
        %263 = sbr.rel (%p261) target = $region44
      $region43: #{residual_block_pallas.1} parent=35 // pred_region
        %s264 = smul.u32 8, %s21
        %p265 = scmp.lt.s32.totalorder %s20, 1
        %s266 = scalar_select %p265, %s20, 1
        %p267 = scmp.lt.s32.totalorder %s264, 7
        %s268 = scalar_select %p267, %s264, 7
        %s269 = smul.addr %s266, 8
        %s270 = sadd.s32 %s268, %s269
        %s271 = smul.addr %s270, 4
        %s272 = scalar_lea.vmem %s1, %s271
        %s273 = smul.u32 8, %s21
      $region44: #{residual_block_pallas.1} parent=35 // pred_fallthru
        _
    $region36: #{residual_block_pallas.1} parent=5 // pred_fallthru
      _
    %p274 = scmp.le.s32.totalorder 1, %s13
    %p275 = scmp.lt.s32.totalorder %s13, 3
    %p276 = pnand %p274, %p275
    %p277 = pneg %p276
    // Predicated region
    $region45: #{residual_block_pallas.1} parent=5 // pred_check
      _
    $region46: #{residual_block_pallas.1} parent=5 // pred_check_branch
      %279 = sbr.rel (%p276) target = $region48
    $region47: #{residual_block_pallas.1} parent=5 // pred_region
      %s280 = ssub.s32 %s13, 1
      %s281 = smul.u32 8, %s23
      %p282 = scmp.lt.s32.totalorder %s22, 1
      %s283 = scalar_select %p282, %s22, 1
      %p284 = scmp.lt.s32.totalorder %s281, 7
      %s285 = scalar_select %p284, %s281, 7
      %s286 = smul.addr %s283, 8
      %s287 = sadd.s32 %s285, %s286
      %s288 = smul.addr %s287, 4
      %s289 = scalar_lea.vmem %s0, %s288
      %p290 = pneg %p53
      %p291 = pneg %p50
      %s292 = smul.u32 8, %s23
      %p293 = scmp.lt.s32.totalorder %s22, 1
      %s294 = scalar_select %p293, %s22, 1
      %p295 = scmp.lt.s32.totalorder %s292, 7
      %s296 = scalar_select %p295, %s292, 7
      %s297 = smul.addr %s294, 8
      %s298 = sadd.s32 %s296, %s297
      %s299 = smul.addr %s298, 4
      %s300 = scalar_lea.vmem %s1, %s299
      %p301 = pneg %p81
      %p302 = pneg %p78
      %p303 = pneg %p102
      %p304 = pneg %p99
      %p305 = pneg %p123
      %p306 = pneg %p120
      %p307 = pneg %p144
      %p308 = pneg %p141
      %p309 = pneg %p165
      %p310 = pneg %p162
      %p311 = pneg %p186
      %p312 = pneg %p183
      %p313 = pneg %p214
      %p314 = pneg %p211
      %p315 = scmp.lt.s32.totalorder %s22, 1
      %s316 = scalar_select %p315, %s22, 1
      %p317 = scmp.lt.s32.totalorder %s23, 0
      %s318 = scalar_select %p317, %s23, 0
      %s319 = smul.addr %s316, 2
      %s320 = sadd.s32 %s318, %s319
      %s321 = smul.addr %s320, 8
      %s322 = scalar_lea.vmem %s7, %s321
      %s323 = smul.u32 8, %s23
      %p324 = scmp.lt.s32.totalorder %s22, 1
      %s325 = scalar_select %p324, %s22, 1
      %p326 = scmp.lt.s32.totalorder %s323, 7
      %s327 = scalar_select %p326, %s323, 7
      %s328 = smul.addr %s325, 8
      %s329 = sadd.s32 %s327, %s328
      %s330 = smul.addr %s329, 4
      %s331 = scalar_lea.vmem %s0, %s330
      %s332 = smul.u32 8, %s23
      %s333 = smul.u32 8, %s23
      %p334 = scmp.lt.s32.totalorder %s22, 1
      %s335 = scalar_select %p334, %s22, 1
      %p336 = scmp.lt.s32.totalorder %s333, 7
      %s337 = scalar_select %p336, %s333, 7
      %s338 = smul.addr %s335, 8
      %s339 = sadd.s32 %s337, %s338
      %s340 = smul.addr %s339, 4
      %s341 = scalar_lea.vmem %s1, %s340
      %s342 = smul.u32 8, %s23
      %p343 = scmp.lt.s32.totalorder %s22, 1
      %s344 = scalar_select %p343, %s22, 1
      %p345 = scmp.lt.s32.totalorder %s23, 0
      %s346 = scalar_select %p345, %s23, 0
      %s347 = smul.addr %s344, 2
      %s348 = sadd.s32 %s346, %s347
      %s349 = smul.addr %s348, 8
      %s350 = scalar_lea.vmem %s7, %s349
      %v352 = vld [vmem:[%s331] sm:$0xf]
      %v353 = vld [vmem:[%s331 + $0x4] sm:$0xf]
      %v354 = vld [vmem:[%s331 + $0x8] sm:$0xf]
      %v355 = vld [vmem:[%s331 + $0xc] sm:$0xf]
      %v356 = vld [vmem:[%s331 + $0x10] sm:$0xf]
      %v357 = vld [vmem:[%s331 + $0x14] sm:$0xf]
      %v358 = vld [vmem:[%s331 + $0x18] sm:$0xf]
      %v359 = vld [vmem:[%s331 + $0x1c] sm:$0xf]
      %v360 = vld [vmem:[%s2] sm:$0xf]
      %v361 = vld [vmem:[%s2 + $0x4] sm:$0xf]
      %v362 = vld [vmem:[%s2 + $0x8] sm:$0xf]
      %v363 = vld [vmem:[%s2 + $0xc] sm:$0xf]
      %v364 = vld [vmem:[%s2 + $0x10] sm:$0x3]
      %v365 = vld [vmem:[%s3] sm:$0x1]
      %v367 = vlaneseq
      %v368 = vshrl.u32 %v367, 7
      %v369 = vsub.s32 0, %v368
      %v370 = vrot.slane %v365, %v369
      %v380 = vunpack.c.l.b16 %v352
      %v381 = vunpack.c.l.b16 %v353
      %v382 = vunpack.c.l.b16 %v354
      %v383 = vunpack.c.l.b16 %v355
      %v384 = vunpack.c.l.b16 %v356
      %v385 = vunpack.c.l.b16 %v357
      %v386 = vunpack.c.l.b16 %v358
      %v387 = vunpack.c.l.b16 %v359
      %v388 = vpack.c.b16 %v381, %v380
      %v389 = vpack.c.b16 %v383, %v382
      %v390 = vpack.c.b16 %v385, %v384
      %v391 = vpack.c.b16 %v387, %v386
      %v397 = vunpack.c.l.b16 %v360
      %v398 = vunpack.c.l.b16 %v361
      %v399 = vunpack.c.l.b16 %v362
      %v400 = vunpack.c.l.b16 %v363
      %v401 = vunpack.c.l.b16 %v364
      %v402 = vpack.c.b16 %v398, %v397
      %v403 = vpack.c.b16 %v400, %v399
      %v404 = vpack.c.b16 %v401, %v401
      %vm407 = vcmask 293888
      %v409 = vsel %vm407, %v388, 0
      %v412 = vsel %vm407, %v389, 0
      %v415 = vsel %vm407, %v390, 0
      %v418 = vsel %vm407, %v391, 0
      %vm420 = vcmask 1041408
      %v422 = vsel %vm420, %v404, 0
      %424 = vmatprep.subr.bf16.mxu0 0
      %425 = vmatpush1.bf16.msra.mxu0 0
      %426 = vmatprep.subr.bf16.mxu0 0
      %427 = vmatpush1.bf16.msra.mxu0 0
      %428 = vmatprep.subr.bf16.mxu0 0
      %429 = vmatpush1.bf16.msra.mxu0 0
      %430 = vmatprep.subr.bf16.mxu0 0
      %431 = vmatpush1.bf16.msra.mxu0 0
      %432 = vmatprep.subr.bf16.mxu0 0
      %433 = vmatpush1.bf16.msra.mxu0 0
      %434 = vmatprep.subr.bf16.mxu0 0
      %435 = vmatpush1.bf16.msra.mxu0 %v422
      %436 = vmatprep.subr.bf16.mxu0 0
      %437 = vmatpush1.bf16.msra.mxu0 %v403
      %438 = vmatprep.subr.bf16.mxu0 0
      %439 = vmatpush1.bf16.msra.mxu0 %v402
      %440 = vmatprep.subr.bf16.mxu0 0
      %441 = vmatpush2.bf16.msra.mxu0 0
      %442 = vmatprep.subr.bf16.mxu0 0
      %443 = vmatpush2.bf16.msra.mxu0 0
      %444 = vmatprep.subr.bf16.mxu0 0
      %445 = vmatpush2.bf16.msra.mxu0 0
      %446 = vmatprep.subr.bf16.mxu0 0
      %447 = vmatpush2.bf16.msra.mxu0 0
      %448 = vmatprep.subr.bf16.mxu0 0
      %449 = vmatpush2.bf16.msra.mxu0 0
      %450 = vmatprep.subr.bf16.mxu0 0
      %451 = vmatpush2.bf16.msra.mxu0 0
      %452 = vmatprep.subr.bf16.mxu0 0
      %453 = vmatpush2.bf16.msra.mxu0 0
      %454 = vmatprep.subr.bf16.mxu0 0
      %455 = vmatpush2.bf16.msra.mxu0 0
      %456 = vmatprep.mubr.bf16.mxu0 0
      %457 = vmatmul.mubr.bf16.gmra.mxu0 %v409
      %v458 = vpop.f32.mrf.mxu0
      %v459 = vadd.f32 %v370, %v458
      %v460 = vpop.f32.mrf.mxu0
      %v461 = vpop.f32.mrf.mxu0
      %v462 = vadd.f32 %v370, %v461
      %v463 = vpop.f32.mrf.mxu0
      %464 = vmatprep.mubr.bf16.mxu0 0
      %465 = vmatmul.mubr.bf16.gmra.mxu0 %v412
      %v466 = vpop.f32.mrf.mxu0
      %v467 = vadd.f32 %v370, %v466
      %v468 = vpop.f32.mrf.mxu0
      %v469 = vpop.f32.mrf.mxu0
      %v470 = vadd.f32 %v370, %v469
      %v471 = vpop.f32.mrf.mxu0
      %472 = vmatprep.mubr.bf16.mxu0 0
      %473 = vmatmul.mubr.bf16.gmra.mxu0 %v415
      %v474 = vpop.f32.mrf.mxu0
      %v475 = vadd.f32 %v370, %v474
      %v476 = vpop.f32.mrf.mxu0
      %v477 = vpop.f32.mrf.mxu0
      %v478 = vadd.f32 %v370, %v477
      %v479 = vpop.f32.mrf.mxu0
      %480 = vmatprep.mubr.bf16.mxu0 0
      %481 = vmatmul.mubr.bf16.gmra.mxu0 %v418
      %v482 = vpop.f32.mrf.mxu0
      %v483 = vadd.f32 %v370, %v482
      %v484 = vpop.f32.mrf.mxu0
      %v485 = vpop.f32.mrf.mxu0
      %v486 = vadd.f32 %v370, %v485
      %v487 = vpop.f32.mrf.mxu0
      %488 = vdwg.mxu0
      %vm489 = vcmp.gt.f32.partialorder %v459, 0.0
      %vm490 = vcmp.gt.f32.partialorder %v462, 0.0
      %vm491 = vcmp.gt.f32.partialorder %v467, 0.0
      %vm492 = vcmp.gt.f32.partialorder %v470, 0.0
      %vm493 = vcmp.gt.f32.partialorder %v475, 0.0
      %vm494 = vcmp.gt.f32.partialorder %v478, 0.0
      %vm495 = vcmp.gt.f32.partialorder %v483, 0.0
      %vm496 = vcmp.gt.f32.partialorder %v486, 0.0
      %v497 = vmul.f32 %v459, 0.25
      %v498 = vmul.f32 %v462, 0.25
      %v499 = vmul.f32 %v467, 0.25
      %v500 = vmul.f32 %v470, 0.25
      %v501 = vmul.f32 %v475, 0.25
      %v502 = vmul.f32 %v478, 0.25
      %v503 = vmul.f32 %v483, 0.25
      %v504 = vmul.f32 %v486, 0.25
      %v505 = vsel %vm489, %v459, %v497
      %v506 = vsel %vm490, %v462, %v498
      %v507 = vsel %vm491, %v467, %v499
      %v508 = vsel %vm492, %v470, %v500
      %v509 = vsel %vm493, %v475, %v501
      %v510 = vsel %vm494, %v478, %v502
      %v511 = vsel %vm495, %v483, %v503
      %v512 = vsel %vm496, %v486, %v504
      %v513 = vpack.c.bf16 %v506, %v505
      %v514 = vpack.c.bf16 %v508, %v507
      %v515 = vpack.c.bf16 %v510, %v509
      %v516 = vpack.c.bf16 %v512, %v511
      %v517 = vld [vmem:[%s4] sm:$0xf]
      %v518 = vld [vmem:[%s341] sm:$0xf]
      %v519 = vld [vmem:[%s341 + $0x4] sm:$0xf]
      %v520 = vld [vmem:[%s341 + $0x8] sm:$0xf]
      %v521 = vld [vmem:[%s341 + $0xc] sm:$0xf]
      %v522 = vld [vmem:[%s341 + $0x10] sm:$0xf]
      %v523 = vld [vmem:[%s341 + $0x14] sm:$0xf]
      %v524 = vld [vmem:[%s341 + $0x18] sm:$0xf]
      %v525 = vld [vmem:[%s341 + $0x1c] sm:$0xf]
      %v526 = vld [vmem:[%s5] sm:$0x3]
      %v535 = vunpack.c.l.b16 %v518
      %v536 = vunpack.c.l.b16 %v519
      %v537 = vunpack.c.l.b16 %v520
      %v538 = vunpack.c.l.b16 %v521
      %v539 = vunpack.c.l.b16 %v522
      %v540 = vunpack.c.l.b16 %v523
      %v541 = vunpack.c.l.b16 %v524
      %v542 = vunpack.c.l.b16 %v525
      %v543 = vpack.c.b16 %v536, %v535
      %v544 = vpack.c.b16 %v538, %v537
      %v545 = vpack.c.b16 %v540, %v539
      %v546 = vpack.c.b16 %v542, %v541
      %vm547 = vcmask 31744
      %v549 = vsel %vm547, %v543, 0
      %v552 = vsel %vm547, %v544, 0
      %v555 = vsel %vm547, %v545, 0
      %v558 = vsel %vm547, %v546, 0
      %v561 = vsel %vm420, %v526, 0
      %563 = vmatprep.subr.bf16.mxu0 0
      %564 = vmatpush1.bf16.msra.mxu0 0
      %565 = vmatprep.subr.bf16.mxu0 0
      %566 = vmatpush1.bf16.msra.mxu0 0
      %567 = vmatprep.subr.bf16.mxu0 0
      %568 = vmatpush1.bf16.msra.mxu0 0
      %569 = vmatprep.subr.bf16.mxu0 0
      %570 = vmatpush1.bf16.msra.mxu0 0
      %571 = vmatprep.subr.bf16.mxu0 0
      %572 = vmatpush1.bf16.msra.mxu0 0
      %573 = vmatprep.subr.bf16.mxu0 0
      %574 = vmatpush1.bf16.msra.mxu0 0
      %575 = vmatprep.subr.bf16.mxu0 0
      %576 = vmatpush1.bf16.msra.mxu0 0
      %577 = vmatprep.subr.bf16.mxu0 0
      %578 = vmatpush1.bf16.msra.mxu0 %v561
      %579 = vmatprep.subr.bf16.mxu0 0
      %580 = vmatpush2.bf16.msra.mxu0 0
      %581 = vmatprep.subr.bf16.mxu0 0
      %582 = vmatpush2.bf16.msra.mxu0 0
      %583 = vmatprep.subr.bf16.mxu0 0
      %584 = vmatpush2.bf16.msra.mxu0 0
      %585 = vmatprep.subr.bf16.mxu0 0
      %586 = vmatpush2.bf16.msra.mxu0 0
      %587 = vmatprep.subr.bf16.mxu0 0
      %588 = vmatpush2.bf16.msra.mxu0 0
      %589 = vmatprep.subr.bf16.mxu0 0
      %590 = vmatpush2.bf16.msra.mxu0 0
      %591 = vmatprep.subr.bf16.mxu0 0
      %592 = vmatpush2.bf16.msra.mxu0 0
      %593 = vmatprep.subr.bf16.mxu0 0
      %594 = vmatpush2.bf16.msra.mxu0 0
      %595 = vmatprep.mubr.bf16.mxu0 0
      %596 = vmatmul.mubr.bf16.gmra.mxu0 %v549
      %v597 = vpop.f32.mrf.mxu0
      %v598 = vadd.f32 0.0, %v597
      %v599 = vpop.f32.mrf.mxu0
      %v600 = vpop.f32.mrf.mxu0
      %v601 = vadd.f32 0.0, %v600
      %v602 = vpop.f32.mrf.mxu0
      %603 = vmatprep.mubr.bf16.mxu0 0
      %604 = vmatmul.mubr.bf16.gmra.mxu0 %v552
      %v605 = vpop.f32.mrf.mxu0
      %v606 = vadd.f32 0.0, %v605
      %v607 = vpop.f32.mrf.mxu0
      %v608 = vpop.f32.mrf.mxu0
      %v609 = vadd.f32 0.0, %v608
      %v610 = vpop.f32.mrf.mxu0
      %611 = vmatprep.mubr.bf16.mxu0 0
      %612 = vmatmul.mubr.bf16.gmra.mxu0 %v555
      %v613 = vpop.f32.mrf.mxu0
      %v614 = vadd.f32 0.0, %v613
      %v615 = vpop.f32.mrf.mxu0
      %v616 = vpop.f32.mrf.mxu0
      %v617 = vadd.f32 0.0, %v616
      %v618 = vpop.f32.mrf.mxu0
      %619 = vmatprep.mubr.bf16.mxu0 0
      %620 = vmatmul.mubr.bf16.gmra.mxu0 %v558
      %v621 = vpop.f32.mrf.mxu0
      %v622 = vadd.f32 0.0, %v621
      %v623 = vpop.f32.mrf.mxu0
      %v624 = vpop.f32.mrf.mxu0
      %v625 = vadd.f32 0.0, %v624
      %v626 = vpop.f32.mrf.mxu0
      %627 = vdwg.mxu0
      %vm628 = vcmask 64512
      %v630 = vsel %vm628, %v513, 0
      %v633 = vsel %vm628, %v514, 0
      %v636 = vsel %vm628, %v515, 0
      %v639 = vsel %vm628, %v516, 0
      %vm641 = vcmask 1043456
      %v643 = vsel %vm641, %v517, 0
      %645 = vmatprep.subr.bf16.mxu0 0
      %646 = vmatpush1.bf16.msra.mxu0 0
      %647 = vmatprep.subr.bf16.mxu0 0
      %648 = vmatpush1.bf16.msra.mxu0 0
      %649 = vmatprep.subr.bf16.mxu0 0
      %650 = vmatpush1.bf16.msra.mxu0 0
      %651 = vmatprep.subr.bf16.mxu0 0
      %652 = vmatpush1.bf16.msra.mxu0 0
      %653 = vmatprep.subr.bf16.mxu0 0
      %654 = vmatpush1.bf16.msra.mxu0 0
      %655 = vmatprep.subr.bf16.mxu0 0
      %656 = vmatpush1.bf16.msra.mxu0 0
      %657 = vmatprep.subr.bf16.mxu0 0
      %658 = vmatpush1.bf16.msra.mxu0 0
      %659 = vmatprep.subr.bf16.mxu0 0
      %660 = vmatpush1.bf16.msra.mxu0 %v643
      %661 = vmatprep.subr.bf16.mxu0 0
      %662 = vmatpush2.bf16.msra.mxu0 0
      %663 = vmatprep.subr.bf16.mxu0 0
      %664 = vmatpush2.bf16.msra.mxu0 0
      %665 = vmatprep.subr.bf16.mxu0 0
      %666 = vmatpush2.bf16.msra.mxu0 0
      %667 = vmatprep.subr.bf16.mxu0 0
      %668 = vmatpush2.bf16.msra.mxu0 0
      %669 = vmatprep.subr.bf16.mxu0 0
      %670 = vmatpush2.bf16.msra.mxu0 0
      %671 = vmatprep.subr.bf16.mxu0 0
      %672 = vmatpush2.bf16.msra.mxu0 0
      %673 = vmatprep.subr.bf16.mxu0 0
      %674 = vmatpush2.bf16.msra.mxu0 0
      %675 = vmatprep.subr.bf16.mxu0 0
      %676 = vmatpush2.bf16.msra.mxu0 0
      %677 = vmatprep.mubr.bf16.mxu0 0
      %678 = vmatmul.mubr.bf16.gmra.mxu0 %v630
      %v679 = vpop.f32.mrf.mxu0
      %v680 = vadd.f32 %v598, %v679
      %v681 = vpop.f32.mrf.mxu0
      %v682 = vpop.f32.mrf.mxu0
      %v683 = vadd.f32 %v601, %v682
      %v684 = vpop.f32.mrf.mxu0
      %685 = vmatprep.mubr.bf16.mxu0 0
      %686 = vmatmul.mubr.bf16.gmra.mxu0 %v633
      %v687 = vpop.f32.mrf.mxu0
      %v688 = vadd.f32 %v606, %v687
      %v689 = vpop.f32.mrf.mxu0
      %v690 = vpop.f32.mrf.mxu0
      %v691 = vadd.f32 %v609, %v690
      %v692 = vpop.f32.mrf.mxu0
      %693 = vmatprep.mubr.bf16.mxu0 0
      %694 = vmatmul.mubr.bf16.gmra.mxu0 %v636
      %v695 = vpop.f32.mrf.mxu0
      %v696 = vadd.f32 %v614, %v695
      %v697 = vpop.f32.mrf.mxu0
      %v698 = vpop.f32.mrf.mxu0
      %v699 = vadd.f32 %v617, %v698
      %v700 = vpop.f32.mrf.mxu0
      %701 = vmatprep.mubr.bf16.mxu0 0
      %702 = vmatmul.mubr.bf16.gmra.mxu0 %v639
      %v703 = vpop.f32.mrf.mxu0
      %v704 = vadd.f32 %v622, %v703
      %v705 = vpop.f32.mrf.mxu0
      %v706 = vpop.f32.mrf.mxu0
      %v707 = vadd.f32 %v625, %v706
      %v708 = vpop.f32.mrf.mxu0
      %709 = vdwg.mxu0
      %710 = vxpose.xlu0.b32.start [1/16] %v680, 128
      %711 = vxpose.xlu0.b32.cont [2/16] %v683, 128
      %712 = vxpose.xlu0.b32.cont [3/16] %v688, 128
      %713 = vxpose.xlu0.b32.cont [4/16] %v691, 128
      %714 = vxpose.xlu0.b32.cont [5/16] %v696, 128
      %715 = vxpose.xlu0.b32.cont [6/16] %v699, 128
      %716 = vxpose.xlu0.b32.cont [7/16] %v704, 128
      %717 = vxpose.xlu0.b32.cont [8/16] %v707, 128
      %718 = vxpose.xlu0.b32.cont [9/16] 0.0, 128
      %719 = vxpose.xlu0.b32.cont [10/16] 0.0, 128
      %720 = vxpose.xlu0.b32.cont [11/16] 0.0, 128
      %721 = vxpose.xlu0.b32.cont [12/16] 0.0, 128
      %722 = vxpose.xlu0.b32.cont [13/16] 0.0, 128
      %723 = vxpose.xlu0.b32.cont [14/16] 0.0, 128
      %724 = vxpose.xlu0.b32.cont [15/16] 0.0, 128
      %725 = vxpose.xlu0.b32.end [16/16] 0.0, 128
      %v726 = vpop.trf.xlu0
      %v727 = vpop.trf.xlu0
      %v728 = vpop.trf.xlu0
      %v729 = vpop.trf.xlu0
      %v730 = vpop.trf.xlu0
      %v731 = vpop.trf.xlu0
      %v732 = vpop.trf.xlu0
      %v733 = vpop.trf.xlu0
      %v734 = vpop.trf.xlu0
      %v735 = vpop.trf.xlu0
      %v736 = vpop.trf.xlu0
      %v737 = vpop.trf.xlu0
      %v738 = vpop.trf.xlu0
      %v739 = vpop.trf.xlu0
      %v740 = vpop.trf.xlu0
      %v741 = vpop.trf.xlu0
      %v742 = vld [vmem:[%s6] sm:$0xff]
      %v743 = vld [vmem:[%s6 + $0x8] sm:$0xff]
      %745 = vset.pattern.permute.xlu0 0
      %746 = vperm.xlu0 %745, %v742
      %v747 = vpop.permute.xlu0 %746
      %750 = vset.pattern.permute.xlu0 0
      %751 = vperm.xlu0 %750, %v743
      %v752 = vpop.permute.xlu0 %751
      %v754 = vadd.f32 %v726, %v747
      %v755 = vadd.f32 %v727, %v752
      %v756 = vmax.f32 %v754, 0.0
      %v757 = vmax.f32 %v755, 0.0
      %vm758 = vcmask 523264
      %759 = vst.msk [vmem:[%s350] sm:$0xff] %vm758, %v756
      %760 = vst.msk [vmem:[%s350 + $0x8] sm:$0xff] %vm758, %v757
      %p761 = scmp.lt.s32.totalorder %s22, 1
      %s762 = scalar_select %p761, %s22, 1
      %p763 = scmp.lt.s32.totalorder %s23, 0
      %s764 = scalar_select %p763, %s23, 0
      %s765 = smul.addr %s762, 2
      %s766 = sadd.s32 %s764, %s765
      %s767 = smul.addr %s766, 8
      %s768 = scalar_lea.vmem %s7, %s767
      // Predicated region
      $region49: #{residual_block_pallas.1} parent=47 // pred_check
        %p769 = pneg %p211
      $region50: #{residual_block_pallas.1} parent=47 // pred_check_branch
        %771 = sbr.rel (%p769) target = $region52
      $region51: #{residual_block_pallas.1} parent=47 // pred_region
        _
      $region52: #{residual_block_pallas.1} parent=47 // pred_fallthru
        _
    $region48: #{residual_block_pallas.1} parent=5 // pred_fallthru
      _
    %p772 = scmp.le.s32.totalorder 2, %s13
    // Predicated region
    $region53: #{residual_block_pallas.1} parent=5 // pred_check
      %p773 = pneg %p772
    $region54: #{residual_block_pallas.1} parent=5 // pred_check_branch
      %775 = sbr.rel (%p773) target = $region56
    $region55: #{residual_block_pallas.1} parent=5 // pred_region
      %s776 = ssub.s32 %s13, 2
      // Predicated region
      $region57: #{residual_block_pallas.1} parent=55 // pred_check
        %p777 = pneg %p217
      $region58: #{residual_block_pallas.1} parent=55 // pred_check_branch
        %779 = sbr.rel (%p777) target = $region60
      $region59: #{residual_block_pallas.1} parent=55 // pred_region
        %p780 = scmp.lt.s32.totalorder %s24, 1
        %s781 = scalar_select %p780, %s24, 1
        %p782 = scmp.lt.s32.totalorder %s25, 0
        %s783 = scalar_select %p782, %s25, 0
        %s784 = smul.addr %s781, 2
        %s785 = sadd.s32 %s783, %s784
        %s786 = smul.addr %s785, 8
        %s787 = scalar_lea.vmem %s7, %s786
      $region60: #{residual_block_pallas.1} parent=55 // pred_fallthru
        _
    $region56: #{residual_block_pallas.1} parent=5 // pred_fallthru
      _
  $region6: #{residual_block_pallas.1} parent=0 // loop_footer
    %s17 = sadd.s32 1, %s13
  $region7: #{residual_block_pallas.1} parent=0 // loop_footer_branch
    %12 = sbr.rel target = $region3
  $region8: #{residual_block_pallas.1} parent=0 // loop_exit
    _

</llo_original>
